<compile_context>
chip_gen: v6e
topology: v6e:2x2x1
jax: 0.10.0
libtpu: 0.0.40
codegen_flags: <defaults>
</compile_context>

<pallas_src>
import functools

import jax
import jax.numpy as jnp
from jax import lax
from jax.experimental import pallas as pl
from jax.experimental.pallas import tpu as pltpu

IGNORE_TOKENS = (0, 1)
REF_SENTINEL = -2   # replaces ignored/padded reference tokens
HYP_SENTINEL = -1   # replaces ignored/padded hypothesis tokens
# NOTE: token ids are assumed non-negative and < 2^31 (true for .long() vocab ids),
# so int32 narrowing is lossless and the sentinels can never produce a spurious match.


def _rougel_kernel(nslab_ref, refs_t3_ref, hyps_ref, ref_len_ref, hyp_len_ref, f1_ref):
    hyps = hyps_ref[...]                       # (Bt, Lh) int32, sentinel-masked
    Bt, Lh = hyps.shape

    # Hillis-Steele prefix-max shifts (shift 1 also provides dp[i-1][j-1]).
    shifts = []
    s = 1
    while s < Lh:
        shifts.append(s)
        s *= 2

    # Loop-invariant shift masks, hoisted unconditionally out of the DP loop.
    lane_h = lax.broadcasted_iota(jnp.int32, (Bt, Lh), 1)
    shift_masks = {sh: lane_h >= sh for sh in shifts}

    def shift_right(x, sh):
        # shifted[:, j] = x[:, j - sh] for j >= sh else 0 (XLU rotate + masked select)
        return jnp.where(shift_masks[sh], pltpu.roll(x, shift=sh, axis=1), 0)

    # LCS DP, one reference row per step, vectorized over the lane (hyp) axis:
    #   dp[i][j] = max(dp[i-1][j], prefixmax_{k<=j}(match(i,k) ? dp[i-1][k-1]+1 : 0))
    # (valid because DP rows are non-decreasing in j).  Reference tokens arrive 8 rows
    # at a time from the slab-transposed input; the 8 inner rows are statically
    # unrolled, amortizing the slab load and letting the scheduler overlap the next
    # row's compare with the current row's serial prefix-max chain.
    def slab_step(s_idx, dp):
        slab = refs_t3_ref[s_idx]              # (Bt, 8): ref tokens for DP rows 8*s_idx..+7
        for r in range(8):
            ref_tok = slab[:, r:r + 1]         # (Bt, 1); sentinel rows never match
            match = hyps == ref_tok
            cand = jnp.where(match, shift_right(dp, 1) + 1, 0)
            for sh in shifts:                  # static unroll: log2(Lh) doubling steps
                cand = jnp.maximum(cand, shift_right(cand, sh))
            dp = jnp.maximum(dp, cand)
        return dp

    # Dynamic trip count (in 8-row slabs) from scalar prefetch; trailing sentinel rows
    # inside the last slab never match and are harmless.
    n_slabs = nslab_ref[pl.program_id(0)]
    dp = lax.fori_loop(0, n_slabs, slab_step, jnp.zeros((Bt, Lh), jnp.int32))

    lcs = jnp.max(dp, axis=1, keepdims=True).astype(jnp.float32)
    ref_len = ref_len_ref[...]
    hyp_len = hyp_len_ref[...]
    prec = jnp.where(hyp_len > 0, lcs / jnp.maximum(hyp_len, 1.0), 0.0)
    rec = jnp.where(ref_len > 0, lcs / jnp.maximum(ref_len, 1.0), 0.0)
    denom = prec + rec
    f1_ref[...] = jnp.where(denom > 0, 2.0 * prec * rec / jnp.maximum(denom, 1e-12), 0.0)


@functools.lru_cache(maxsize=None)
def _rougel_pallas(n_blocks, n_slabs, Bt, Lh):
    grid_spec = pltpu.PrefetchScalarGridSpec(
        num_scalar_prefetch=1,
        grid=(n_blocks,),
        in_specs=[
            pl.BlockSpec((n_slabs, Bt, 8), lambda i, bounds: (0, i, 0)),   # refs_t3
            pl.BlockSpec((Bt, Lh), lambda i, bounds: (i, 0)),              # hyps
            pl.BlockSpec((Bt, 1), lambda i, bounds: (i, 0)),               # ref_len
            pl.BlockSpec((Bt, 1), lambda i, bounds: (i, 0)),               # hyp_len
        ],
        out_specs=pl.BlockSpec((Bt, 1), lambda i, bounds: (i, 0)),
    )
    return pl.pallas_call(
        _rougel_kernel,
        out_shape=jax.ShapeDtypeStruct((n_blocks * Bt, 1), jnp.float32),
        grid_spec=grid_spec,
        compiler_params=pltpu.CompilerParams(
            dimension_semantics=("parallel",),
            vmem_limit_bytes=32 * 1024 * 1024,
        ),
    )


def _round_up(x, m):
    return ((x + m - 1) // m) * m


def _fit_cols(x, width, fill):
    cur = x.shape[1]
    if cur >= width:
        return x[:, :width]
    return jnp.pad(x, ((0, 0), (0, width - cur)), constant_values=fill)


def rougel_f1(targets, outputs):
    """targets: (B, Lt) reference token ids; outputs: (B, Lo) hypothesis token ids.

    Returns the batch-mean ROUGE-L F1 with ignore_tokens=[0, 1], matching
    unitorch's RougelScore.forward(outputs, targets).
    """
    refs = jnp.asarray(targets).astype(jnp.int32)
    hyps = jnp.asarray(outputs).astype(jnp.int32)
    B = refs.shape[0]

    ref_valid = (refs != IGNORE_TOKENS[0]) & (refs != IGNORE_TOKENS[1])
    hyp_valid = (hyps != IGNORE_TOKENS[0]) & (hyps != IGNORE_TOKENS[1])
    ref_len = jnp.sum(ref_valid, axis=1).astype(jnp.float32)            # (B,)
    hyp_len = jnp.sum(hyp_valid, axis=1).astype(jnp.float32)            # (B,)

    lane_r = jnp.arange(refs.shape[1], dtype=jnp.int32)[None, :]
    lane_o = jnp.arange(hyps.shape[1], dtype=jnp.int32)[None, :]
    row_bound = jnp.max(jnp.where(ref_valid, lane_r + 1, 0), axis=1)    # DP rows per row
    hyp_bound = jnp.max(jnp.where(hyp_valid, lane_o + 1, 0), axis=1)

    # Trim static ref/hyp extents to actual non-ignore content (host sync; Pallas
    # block shapes must be static).
    Lr = _round_up(max(int(jnp.max(row_bound)), 1), 8)
    Lh = _round_up(max(int(jnp.max(hyp_bound)), 1), 128)
    n_slabs = Lr // 8

    # Batch tile sized from the dp carry footprint (Bt*Lh*4B <= ~64 KiB, i.e. ~16
    # vregs), then forced to give >= 2 grid blocks when the batch allows (megacore).
    bt_cap = max(8, min(64, (16384 // Lh) // 8 * 8))
    Bp8 = _round_up(B, 8)
    Bt = min(bt_cap, Bp8)
    if Bp8 >= 16:
        Bt = min(Bt, max(8, (Bp8 // 2) // 8 * 8))
    Bp = _round_up(B, Bt)
    n_blocks = Bp // Bt

    # Sort rows by DP trip count so each block's fori_loop bound ~= its rows' real
    # length (output is only consumed as a batch mean, so no inverse permutation).
    order = jnp.argsort(row_bound)

    refs_s = _fit_cols(jnp.where(ref_valid, refs, REF_SENTINEL)[order], Lr, REF_SENTINEL)
    hyps_s = _fit_cols(jnp.where(hyp_valid, hyps, HYP_SENTINEL)[order], Lh, HYP_SENTINEL)
    pad = Bp - B
    refs_s = jnp.pad(refs_s, ((0, pad), (0, 0)), constant_values=REF_SENTINEL)
    hyps_s = jnp.pad(hyps_s, ((0, pad), (0, 0)), constant_values=HYP_SENTINEL)
    ref_len_s = jnp.pad(ref_len[order], (0, pad))[:, None]
    hyp_len_s = jnp.pad(hyp_len[order], (0, pad))[:, None]
    bounds_s = jnp.pad(row_bound[order], (0, pad))

    # Slab-transposed refs: refs_t3[s, b, r] = refs_s[b, 8*s + r]; the kernel reads 8
    # DP rows per dynamic leading-axis load instead of a per-row one-hot reduce.
    refs_t3 = jnp.transpose(refs_s.reshape(Bp, n_slabs, 8), (1, 0, 2))

    # Per-block DP bound in 8-row slabs (scalar prefetch / SMEM).
    block_slabs = ((jnp.max(bounds_s.reshape(n_blocks, Bt), axis=1) + 7) // 8).astype(jnp.int32)

    f1 = _rougel_pallas(n_blocks, n_slabs, Bt, Lh)(
        block_slabs, refs_t3, hyps_s, ref_len_s, hyp_len_s)

    # Batch mean over the real rows only (sorted real rows occupy [:B]).
    return jnp.mean(f1[:B, 0])


def _reference_rougel_f1(refs, hyps):
    """Pure-Python reference for verification."""
    import numpy as np
    f1s = []
    for r, h in zip(np.asarray(refs), np.asarray(hyps)):
        r = [int(t) for t in r.tolist() if int(t) not in IGNORE_TOKENS]
        h = [int(t) for t in h.tolist() if int(t) not in IGNORE_TOKENS]
        dp = [[0] * (len(h) + 1) for _ in range(len(r) + 1)]
        for i in range(1, len(r) + 1):
            for j in range(1, len(h) + 1):
                if r[i - 1] == h[j - 1]:
                    dp[i][j] = dp[i - 1][j - 1] + 1
                else:
                    dp[i][j] = max(dp[i - 1][j], dp[i][j - 1])
        lcs = dp[len(r)][len(h)]
        p = lcs / len(h) if len(h) else 0.0
        rc = lcs / len(r) if len(r) else 0.0
        f1s.append(2 * p * rc / (p + rc) if (p + rc) > 0 else 0.0)
    return float(np.mean(f1s))


if __name__ == "__main__":
    key = jax.random.PRNGKey(0)
    k1, k2, k3, k4 = jax.random.split(key, 4)

    # Case 1: module-scale small shapes (batch=2, seq=8); tokens 0/1 occur and are ignored.
    t1 = jax.random.randint(k1, (2, 8), 0, 10, dtype=jnp.int32)   # refs (targets)
    o1 = jax.random.randint(k2, (2, 8), 0, 10, dtype=jnp.int32)   # hyps (outputs)
    f1 = jax.block_until_ready(rougel_f1(t1, o1))
    ref1 = _reference_rougel_f1(t1, o1)
    assert abs(float(f1) - ref1) < 1e-5, (float(f1), ref1)

    # Case 2: multi-block grid, uneven ref/hyp lengths, row sorting + batch padding.
    t2 = jax.random.randint(k3, (10, 12), 0, 6, dtype=jnp.int32)
    o2 = jax.random.randint(k4, (10, 9), 0, 6, dtype=jnp.int32)
    f2 = jax.block_until_ready(rougel_f1(t2, o2))
    ref2 = _reference_rougel_f1(t2, o2)
    assert abs(float(f2) - ref2) < 1e-5, (float(f2), ref2)

    print("KERNEL_OK")
</pallas_src>

<mosaic_0001>
module attributes {stable_mosaic.version = 11 : i64} {
  func.func @_rougel_kernel(%arg0: i32, %arg1: memref<1xi32, #tpu.memory_space<smem>>, %arg2: memref<1x8x8xi32, #tpu.memory_space<vmem>>, %arg3: memref<8x128xi32, #tpu.memory_space<vmem>>, %arg4: memref<8x1xf32, #tpu.memory_space<vmem>>, %arg5: memref<8x1xf32, #tpu.memory_space<vmem>>, %arg6: memref<8x1xf32, #tpu.memory_space<vmem>>) attributes {dimension_semantics = [#tpu.dimension_semantics<parallel>], iteration_bounds = array<i64: 1>, scalar_prefetch = 1 : i64, scratch_operands = 0 : i64, tpu.core_type = #tpu.core_type<tc>, window_params = [{transform_indices = @transform_0, window_bounds = array<i64: 1, 8, 8>}, {transform_indices = @transform_1, window_bounds = array<i64: 8, 128>}, {transform_indices = @transform_2, window_bounds = array<i64: 8, 1>}, {transform_indices = @transform_3, window_bounds = array<i64: 8, 1>}, {transform_indices = @transform_4, window_bounds = array<i64: 8, 1>}]} {
    %c0 = arith.constant 0 : index
    %c0_0 = arith.constant 0 : index
    %0 = vector.load %arg3[%c0, %c0_0] : memref<8x128xi32, #tpu.memory_space<vmem>>, vector<8x128xi32>
    %1 = tpu.iota {dimensions = array<i32: 1>} : vector<8x128xi32>
    %c1_i32 = arith.constant 1 : i32
    %2 = vector.broadcast %c1_i32 : i32 to vector<8x128xi32>
    %3 = arith.cmpi sge, %1, %2 : vector<8x128xi32>
    %c2_i32 = arith.constant 2 : i32
    %4 = vector.broadcast %c2_i32 : i32 to vector<8x128xi32>
    %5 = arith.cmpi sge, %1, %4 : vector<8x128xi32>
    %c4_i32 = arith.constant 4 : i32
    %6 = vector.broadcast %c4_i32 : i32 to vector<8x128xi32>
    %7 = arith.cmpi sge, %1, %6 : vector<8x128xi32>
    %c8_i32 = arith.constant 8 : i32
    %8 = vector.broadcast %c8_i32 : i32 to vector<8x128xi32>
    %9 = arith.cmpi sge, %1, %8 : vector<8x128xi32>
    %c16_i32 = arith.constant 16 : i32
    %10 = vector.broadcast %c16_i32 : i32 to vector<8x128xi32>
    %11 = arith.cmpi sge, %1, %10 : vector<8x128xi32>
    %c32_i32 = arith.constant 32 : i32
    %12 = vector.broadcast %c32_i32 : i32 to vector<8x128xi32>
    %13 = arith.cmpi sge, %1, %12 : vector<8x128xi32>
    %c64_i32 = arith.constant 64 : i32
    %14 = vector.broadcast %c64_i32 : i32 to vector<8x128xi32>
    %15 = arith.cmpi sge, %1, %14 : vector<8x128xi32>
    %16 = arith.index_cast %arg0 : i32 to index
    %17 = memref.load %arg1[%16] : memref<1xi32, #tpu.memory_space<smem>>
    %c0_i32 = arith.constant 0 : i32
    %18 = vector.broadcast %c0_i32 : i32 to vector<8x128xi32>
    %c0_i32_1 = arith.constant 0 : i32
    %19 = arith.subi %17, %c0_i32_1 : i32
    %20 = arith.addi %c0_i32_1, %19 : i32
    %c1_i32_2 = arith.constant 1 : i32
    %21 = scf.for %arg7 = %c0_i32_1 to %20 step %c1_i32_2 iter_args(%arg8 = %18) -> (vector<8x128xi32>)  : i32 {
      %53 = arith.index_cast %arg7 : i32 to index
      %c0_19 = arith.constant 0 : index
      %c0_20 = arith.constant 0 : index
      %54 = vector.load %arg2[%53, %c0_19, %c0_20] : memref<1x8x8xi32, #tpu.memory_space<vmem>>, vector<1x8x8xi32>
      %55 = vector.shape_cast %54 : vector<1x8x8xi32> to vector<8x8xi32>
      %56 = vector.extract_strided_slice %55 {offsets = [0, 0], sizes = [8, 1], strides = [1, 1]} : vector<8x8xi32> to vector<8x1xi32>
      %57 = vector.broadcast %56 : vector<8x1xi32> to vector<8x128xi32>
      %58 = arith.cmpi eq, %0, %57 : vector<8x128xi32>
      %c1_i32_21 = arith.constant 1 : i32
      %59 = tpu.dynamic_rotate %arg8 by %c1_i32_21 dim 1 : vector<8x128xi32>, i32 -> vector<8x128xi32>
      %c0_i32_22 = arith.constant 0 : i32
      %60 = vector.broadcast %c0_i32_22 : i32 to vector<8x128xi32>
      %61 = arith.select %3, %59, %60 : vector<8x128xi1>, vector<8x128xi32>
      %c1_i32_23 = arith.constant 1 : i32
      %62 = vector.broadcast %c1_i32_23 : i32 to vector<8x128xi32>
      %63 = arith.addi %61, %62 : vector<8x128xi32>
      %c0_i32_24 = arith.constant 0 : i32
      %64 = vector.broadcast %c0_i32_24 : i32 to vector<8x128xi32>
      %65 = arith.select %58, %63, %64 : vector<8x128xi1>, vector<8x128xi32>
      %c1_i32_25 = arith.constant 1 : i32
      %66 = tpu.dynamic_rotate %65 by %c1_i32_25 dim 1 : vector<8x128xi32>, i32 -> vector<8x128xi32>
      %c0_i32_26 = arith.constant 0 : i32
      %67 = vector.broadcast %c0_i32_26 : i32 to vector<8x128xi32>
      %68 = arith.select %3, %66, %67 : vector<8x128xi1>, vector<8x128xi32>
      %69 = arith.maxsi %65, %68 : vector<8x128xi32>
      %c2_i32_27 = arith.constant 2 : i32
      %70 = tpu.dynamic_rotate %69 by %c2_i32_27 dim 1 : vector<8x128xi32>, i32 -> vector<8x128xi32>
      %c0_i32_28 = arith.constant 0 : i32
      %71 = vector.broadcast %c0_i32_28 : i32 to vector<8x128xi32>
      %72 = arith.select %5, %70, %71 : vector<8x128xi1>, vector<8x128xi32>
      %73 = arith.maxsi %69, %72 : vector<8x128xi32>
      %c4_i32_29 = arith.constant 4 : i32
      %74 = tpu.dynamic_rotate %73 by %c4_i32_29 dim 1 : vector<8x128xi32>, i32 -> vector<8x128xi32>
      %c0_i32_30 = arith.constant 0 : i32
      %75 = vector.broadcast %c0_i32_30 : i32 to vector<8x128xi32>
      %76 = arith.select %7, %74, %75 : vector<8x128xi1>, vector<8x128xi32>
      %77 = arith.maxsi %73, %76 : vector<8x128xi32>
      %c8_i32_31 = arith.constant 8 : i32
      %78 = tpu.dynamic_rotate %77 by %c8_i32_31 dim 1 : vector<8x128xi32>, i32 -> vector<8x128xi32>
      %c0_i32_32 = arith.constant 0 : i32
      %79 = vector.broadcast %c0_i32_32 : i32 to vector<8x128xi32>
      %80 = arith.select %9, %78, %79 : vector<8x128xi1>, vector<8x128xi32>
      %81 = arith.maxsi %77, %80 : vector<8x128xi32>
      %c16_i32_33 = arith.constant 16 : i32
      %82 = tpu.dynamic_rotate %81 by %c16_i32_33 dim 1 : vector<8x128xi32>, i32 -> vector<8x128xi32>
      %c0_i32_34 = arith.constant 0 : i32
      %83 = vector.broadcast %c0_i32_34 : i32 to vector<8x128xi32>
      %84 = arith.select %11, %82, %83 : vector<8x128xi1>, vector<8x128xi32>
      %85 = arith.maxsi %81, %84 : vector<8x128xi32>
      %c32_i32_35 = arith.constant 32 : i32
      %86 = tpu.dynamic_rotate %85 by %c32_i32_35 dim 1 : vector<8x128xi32>, i32 -> vector<8x128xi32>
      %c0_i32_36 = arith.constant 0 : i32
      %87 = vector.broadcast %c0_i32_36 : i32 to vector<8x128xi32>
      %88 = arith.select %13, %86, %87 : vector<8x128xi1>, vector<8x128xi32>
      %89 = arith.maxsi %85, %88 : vector<8x128xi32>
      %c64_i32_37 = arith.constant 64 : i32
      %90 = tpu.dynamic_rotate %89 by %c64_i32_37 dim 1 : vector<8x128xi32>, i32 -> vector<8x128xi32>
      %c0_i32_38 = arith.constant 0 : i32
      %91 = vector.broadcast %c0_i32_38 : i32 to vector<8x128xi32>
      %92 = arith.select %15, %90, %91 : vector<8x128xi1>, vector<8x128xi32>
      %93 = arith.maxsi %89, %92 : vector<8x128xi32>
      %94 = arith.maxsi %arg8, %93 : vector<8x128xi32>
      %95 = vector.extract_strided_slice %55 {offsets = [0, 1], sizes = [8, 1], strides = [1, 1]} : vector<8x8xi32> to vector<8x1xi32>
      %96 = vector.broadcast %95 : vector<8x1xi32> to vector<8x128xi32>
      %97 = arith.cmpi eq, %0, %96 : vector<8x128xi32>
      %c1_i32_39 = arith.constant 1 : i32
      %98 = tpu.dynamic_rotate %94 by %c1_i32_39 dim 1 : vector<8x128xi32>, i32 -> vector<8x128xi32>
      %c0_i32_40 = arith.constant 0 : i32
      %99 = vector.broadcast %c0_i32_40 : i32 to vector<8x128xi32>
      %100 = arith.select %3, %98, %99 : vector<8x128xi1>, vector<8x128xi32>
      %c1_i32_41 = arith.constant 1 : i32
      %101 = vector.broadcast %c1_i32_41 : i32 to vector<8x128xi32>
      %102 = arith.addi %100, %101 : vector<8x128xi32>
      %c0_i32_42 = arith.constant 0 : i32
      %103 = vector.broadcast %c0_i32_42 : i32 to vector<8x128xi32>
      %104 = arith.select %97, %102, %103 : vector<8x128xi1>, vector<8x128xi32>
      %c1_i32_43 = arith.constant 1 : i32
      %105 = tpu.dynamic_rotate %104 by %c1_i32_43 dim 1 : vector<8x128xi32>, i32 -> vector<8x128xi32>
      %c0_i32_44 = arith.constant 0 : i32
      %106 = vector.broadcast %c0_i32_44 : i32 to vector<8x128xi32>
      %107 = arith.select %3, %105, %106 : vector<8x128xi1>, vector<8x128xi32>
      %108 = arith.maxsi %104, %107 : vector<8x128xi32>
      %c2_i32_45 = arith.constant 2 : i32
      %109 = tpu.dynamic_rotate %108 by %c2_i32_45 dim 1 : vector<8x128xi32>, i32 -> vector<8x128xi32>
      %c0_i32_46 = arith.constant 0 : i32
      %110 = vector.broadcast %c0_i32_46 : i32 to vector<8x128xi32>
      %111 = arith.select %5, %109, %110 : vector<8x128xi1>, vector<8x128xi32>
      %112 = arith.maxsi %108, %111 : vector<8x128xi32>
      %c4_i32_47 = arith.constant 4 : i32
      %113 = tpu.dynamic_rotate %112 by %c4_i32_47 dim 1 : vector<8x128xi32>, i32 -> vector<8x128xi32>
      %c0_i32_48 = arith.constant 0 : i32
      %114 = vector.broadcast %c0_i32_48 : i32 to vector<8x128xi32>
      %115 = arith.select %7, %113, %114 : vector<8x128xi1>, vector<8x128xi32>
      %116 = arith.maxsi %112, %115 : vector<8x128xi32>
      %c8_i32_49 = arith.constant 8 : i32
      %117 = tpu.dynamic_rotate %116 by %c8_i32_49 dim 1 : vector<8x128xi32>, i32 -> vector<8x128xi32>
      %c0_i32_50 = arith.constant 0 : i32
      %118 = vector.broadcast %c0_i32_50 : i32 to vector<8x128xi32>
      %119 = arith.select %9, %117, %118 : vector<8x128xi1>, vector<8x128xi32>
      %120 = arith.maxsi %116, %119 : vector<8x128xi32>
      %c16_i32_51 = arith.constant 16 : i32
      %121 = tpu.dynamic_rotate %120 by %c16_i32_51 dim 1 : vector<8x128xi32>, i32 -> vector<8x128xi32>
      %c0_i32_52 = arith.constant 0 : i32
      %122 = vector.broadcast %c0_i32_52 : i32 to vector<8x128xi32>
      %123 = arith.select %11, %121, %122 : vector<8x128xi1>, vector<8x128xi32>
      %124 = arith.maxsi %120, %123 : vector<8x128xi32>
      %c32_i32_53 = arith.constant 32 : i32
      %125 = tpu.dynamic_rotate %124 by %c32_i32_53 dim 1 : vector<8x128xi32>, i32 -> vector<8x128xi32>
      %c0_i32_54 = arith.constant 0 : i32
      %126 = vector.broadcast %c0_i32_54 : i32 to vector<8x128xi32>
      %127 = arith.select %13, %125, %126 : vector<8x128xi1>, vector<8x128xi32>
      %128 = arith.maxsi %124, %127 : vector<8x128xi32>
      %c64_i32_55 = arith.constant 64 : i32
      %129 = tpu.dynamic_rotate %128 by %c64_i32_55 dim 1 : vector<8x128xi32>, i32 -> vector<8x128xi32>
      %c0_i32_56 = arith.constant 0 : i32
      %130 = vector.broadcast %c0_i32_56 : i32 to vector<8x128xi32>
      %131 = arith.select %15, %129, %130 : vector<8x128xi1>, vector<8x128xi32>
      %132 = arith.maxsi %128, %131 : vector<8x128xi32>
      %133 = arith.maxsi %94, %132 : vector<8x128xi32>
      %134 = vector.extract_strided_slice %55 {offsets = [0, 2], sizes = [8, 1], strides = [1, 1]} : vector<8x8xi32> to vector<8x1xi32>
      %135 = vector.broadcast %134 : vector<8x1xi32> to vector<8x128xi32>
      %136 = arith.cmpi eq, %0, %135 : vector<8x128xi32>
      %c1_i32_57 = arith.constant 1 : i32
      %137 = tpu.dynamic_rotate %133 by %c1_i32_57 dim 1 : vector<8x128xi32>, i32 -> vector<8x128xi32>
      %c0_i32_58 = arith.constant 0 : i32
      %138 = vector.broadcast %c0_i32_58 : i32 to vector<8x128xi32>
      %139 = arith.select %3, %137, %138 : vector<8x128xi1>, vector<8x128xi32>
      %c1_i32_59 = arith.constant 1 : i32
      %140 = vector.broadcast %c1_i32_59 : i32 to vector<8x128xi32>
      %141 = arith.addi %139, %140 : vector<8x128xi32>
      %c0_i32_60 = arith.constant 0 : i32
      %142 = vector.broadcast %c0_i32_60 : i32 to vector<8x128xi32>
      %143 = arith.select %136, %141, %142 : vector<8x128xi1>, vector<8x128xi32>
      %c1_i32_61 = arith.constant 1 : i32
      %144 = tpu.dynamic_rotate %143 by %c1_i32_61 dim 1 : vector<8x128xi32>, i32 -> vector<8x128xi32>
      %c0_i32_62 = arith.constant 0 : i32
      %145 = vector.broadcast %c0_i32_62 : i32 to vector<8x128xi32>
      %146 = arith.select %3, %144, %145 : vector<8x128xi1>, vector<8x128xi32>
      %147 = arith.maxsi %143, %146 : vector<8x128xi32>
      %c2_i32_63 = arith.constant 2 : i32
      %148 = tpu.dynamic_rotate %147 by %c2_i32_63 dim 1 : vector<8x128xi32>, i32 -> vector<8x128xi32>
      %c0_i32_64 = arith.constant 0 : i32
      %149 = vector.broadcast %c0_i32_64 : i32 to vector<8x128xi32>
      %150 = arith.select %5, %148, %149 : vector<8x128xi1>, vector<8x128xi32>
      %151 = arith.maxsi %147, %150 : vector<8x128xi32>
      %c4_i32_65 = arith.constant 4 : i32
      %152 = tpu.dynamic_rotate %151 by %c4_i32_65 dim 1 : vector<8x128xi32>, i32 -> vector<8x128xi32>
      %c0_i32_66 = arith.constant 0 : i32
      %153 = vector.broadcast %c0_i32_66 : i32 to vector<8x128xi32>
      %154 = arith.select %7, %152, %153 : vector<8x128xi1>, vector<8x128xi32>
      %155 = arith.maxsi %151, %154 : vector<8x128xi32>
      %c8_i32_67 = arith.constant 8 : i32
      %156 = tpu.dynamic_rotate %155 by %c8_i32_67 dim 1 : vector<8x128xi32>, i32 -> vector<8x128xi32>
      %c0_i32_68 = arith.constant 0 : i32
      %157 = vector.broadcast %c0_i32_68 : i32 to vector<8x128xi32>
      %158 = arith.select %9, %156, %157 : vector<8x128xi1>, vector<8x128xi32>
      %159 = arith.maxsi %155, %158 : vector<8x128xi32>
      %c16_i32_69 = arith.constant 16 : i32
      %160 = tpu.dynamic_rotate %159 by %c16_i32_69 dim 1 : vector<8x128xi32>, i32 -> vector<8x128xi32>
      %c0_i32_70 = arith.constant 0 : i32
      %161 = vector.broadcast %c0_i32_70 : i32 to vector<8x128xi32>
      %162 = arith.select %11, %160, %161 : vector<8x128xi1>, vector<8x128xi32>
      %163 = arith.maxsi %159, %162 : vector<8x128xi32>
      %c32_i32_71 = arith.constant 32 : i32
      %164 = tpu.dynamic_rotate %163 by %c32_i32_71 dim 1 : vector<8x128xi32>, i32 -> vector<8x128xi32>
      %c0_i32_72 = arith.constant 0 : i32
      %165 = vector.broadcast %c0_i32_72 : i32 to vector<8x128xi32>
      %166 = arith.select %13, %164, %165 : vector<8x128xi1>, vector<8x128xi32>
      %167 = arith.maxsi %163, %166 : vector<8x128xi32>
      %c64_i32_73 = arith.constant 64 : i32
      %168 = tpu.dynamic_rotate %167 by %c64_i32_73 dim 1 : vector<8x128xi32>, i32 -> vector<8x128xi32>
      %c0_i32_74 = arith.constant 0 : i32
      %169 = vector.broadcast %c0_i32_74 : i32 to vector<8x128xi32>
      %170 = arith.select %15, %168, %169 : vector<8x128xi1>, vector<8x128xi32>
      %171 = arith.maxsi %167, %170 : vector<8x128xi32>
      %172 = arith.maxsi %133, %171 : vector<8x128xi32>
      %173 = vector.extract_strided_slice %55 {offsets = [0, 3], sizes = [8, 1], strides = [1, 1]} : vector<8x8xi32> to vector<8x1xi32>
      %174 = vector.broadcast %173 : vector<8x1xi32> to vector<8x128xi32>
      %175 = arith.cmpi eq, %0, %174 : vector<8x128xi32>
      %c1_i32_75 = arith.constant 1 : i32
      %176 = tpu.dynamic_rotate %172 by %c1_i32_75 dim 1 : vector<8x128xi32>, i32 -> vector<8x128xi32>
      %c0_i32_76 = arith.constant 0 : i32
      %177 = vector.broadcast %c0_i32_76 : i32 to vector<8x128xi32>
      %178 = arith.select %3, %176, %177 : vector<8x128xi1>, vector<8x128xi32>
      %c1_i32_77 = arith.constant 1 : i32
      %179 = vector.broadcast %c1_i32_77 : i32 to vector<8x128xi32>
      %180 = arith.addi %178, %179 : vector<8x128xi32>
      %c0_i32_78 = arith.constant 0 : i32
      %181 = vector.broadcast %c0_i32_78 : i32 to vector<8x128xi32>
      %182 = arith.select %175, %180, %181 : vector<8x128xi1>, vector<8x128xi32>
      %c1_i32_79 = arith.constant 1 : i32
      %183 = tpu.dynamic_rotate %182 by %c1_i32_79 dim 1 : vector<8x128xi32>, i32 -> vector<8x128xi32>
      %c0_i32_80 = arith.constant 0 : i32
      %184 = vector.broadcast %c0_i32_80 : i32 to vector<8x128xi32>
      %185 = arith.select %3, %183, %184 : vector<8x128xi1>, vector<8x128xi32>
      %186 = arith.maxsi %182, %185 : vector<8x128xi32>
      %c2_i32_81 = arith.constant 2 : i32
      %187 = tpu.dynamic_rotate %186 by %c2_i32_81 dim 1 : vector<8x128xi32>, i32 -> vector<8x128xi32>
      %c0_i32_82 = arith.constant 0 : i32
      %188 = vector.broadcast %c0_i32_82 : i32 to vector<8x128xi32>
      %189 = arith.select %5, %187, %188 : vector<8x128xi1>, vector<8x128xi32>
      %190 = arith.maxsi %186, %189 : vector<8x128xi32>
      %c4_i32_83 = arith.constant 4 : i32
      %191 = tpu.dynamic_rotate %190 by %c4_i32_83 dim 1 : vector<8x128xi32>, i32 -> vector<8x128xi32>
      %c0_i32_84 = arith.constant 0 : i32
      %192 = vector.broadcast %c0_i32_84 : i32 to vector<8x128xi32>
      %193 = arith.select %7, %191, %192 : vector<8x128xi1>, vector<8x128xi32>
      %194 = arith.maxsi %190, %193 : vector<8x128xi32>
      %c8_i32_85 = arith.constant 8 : i32
      %195 = tpu.dynamic_rotate %194 by %c8_i32_85 dim 1 : vector<8x128xi32>, i32 -> vector<8x128xi32>
      %c0_i32_86 = arith.constant 0 : i32
      %196 = vector.broadcast %c0_i32_86 : i32 to vector<8x128xi32>
      %197 = arith.select %9, %195, %196 : vector<8x128xi1>, vector<8x128xi32>
      %198 = arith.maxsi %194, %197 : vector<8x128xi32>
      %c16_i32_87 = arith.constant 16 : i32
      %199 = tpu.dynamic_rotate %198 by %c16_i32_87 dim 1 : vector<8x128xi32>, i32 -> vector<8x128xi32>
      %c0_i32_88 = arith.constant 0 : i32
      %200 = vector.broadcast %c0_i32_88 : i32 to vector<8x128xi32>
      %201 = arith.select %11, %199, %200 : vector<8x128xi1>, vector<8x128xi32>
      %202 = arith.maxsi %198, %201 : vector<8x128xi32>
      %c32_i32_89 = arith.constant 32 : i32
      %203 = tpu.dynamic_rotate %202 by %c32_i32_89 dim 1 : vector<8x128xi32>, i32 -> vector<8x128xi32>
      %c0_i32_90 = arith.constant 0 : i32
      %204 = vector.broadcast %c0_i32_90 : i32 to vector<8x128xi32>
      %205 = arith.select %13, %203, %204 : vector<8x128xi1>, vector<8x128xi32>
      %206 = arith.maxsi %202, %205 : vector<8x128xi32>
      %c64_i32_91 = arith.constant 64 : i32
      %207 = tpu.dynamic_rotate %206 by %c64_i32_91 dim 1 : vector<8x128xi32>, i32 -> vector<8x128xi32>
      %c0_i32_92 = arith.constant 0 : i32
      %208 = vector.broadcast %c0_i32_92 : i32 to vector<8x128xi32>
      %209 = arith.select %15, %207, %208 : vector<8x128xi1>, vector<8x128xi32>
      %210 = arith.maxsi %206, %209 : vector<8x128xi32>
      %211 = arith.maxsi %172, %210 : vector<8x128xi32>
      %212 = vector.extract_strided_slice %55 {offsets = [0, 4], sizes = [8, 1], strides = [1, 1]} : vector<8x8xi32> to vector<8x1xi32>
      %213 = vector.broadcast %212 : vector<8x1xi32> to vector<8x128xi32>
      %214 = arith.cmpi eq, %0, %213 : vector<8x128xi32>
      %c1_i32_93 = arith.constant 1 : i32
      %215 = tpu.dynamic_rotate %211 by %c1_i32_93 dim 1 : vector<8x128xi32>, i32 -> vector<8x128xi32>
      %c0_i32_94 = arith.constant 0 : i32
      %216 = vector.broadcast %c0_i32_94 : i32 to vector<8x128xi32>
      %217 = arith.select %3, %215, %216 : vector<8x128xi1>, vector<8x128xi32>
      %c1_i32_95 = arith.constant 1 : i32
      %218 = vector.broadcast %c1_i32_95 : i32 to vector<8x128xi32>
      %219 = arith.addi %217, %218 : vector<8x128xi32>
      %c0_i32_96 = arith.constant 0 : i32
      %220 = vector.broadcast %c0_i32_96 : i32 to vector<8x128xi32>
      %221 = arith.select %214, %219, %220 : vector<8x128xi1>, vector<8x128xi32>
      %c1_i32_97 = arith.constant 1 : i32
      %222 = tpu.dynamic_rotate %221 by %c1_i32_97 dim 1 : vector<8x128xi32>, i32 -> vector<8x128xi32>
      %c0_i32_98 = arith.constant 0 : i32
      %223 = vector.broadcast %c0_i32_98 : i32 to vector<8x128xi32>
      %224 = arith.select %3, %222, %223 : vector<8x128xi1>, vector<8x128xi32>
      %225 = arith.maxsi %221, %224 : vector<8x128xi32>
      %c2_i32_99 = arith.constant 2 : i32
      %226 = tpu.dynamic_rotate %225 by %c2_i32_99 dim 1 : vector<8x128xi32>, i32 -> vector<8x128xi32>
      %c0_i32_100 = arith.constant 0 : i32
      %227 = vector.broadcast %c0_i32_100 : i32 to vector<8x128xi32>
      %228 = arith.select %5, %226, %227 : vector<8x128xi1>, vector<8x128xi32>
      %229 = arith.maxsi %225, %228 : vector<8x128xi32>
      %c4_i32_101 = arith.constant 4 : i32
      %230 = tpu.dynamic_rotate %229 by %c4_i32_101 dim 1 : vector<8x128xi32>, i32 -> vector<8x128xi32>
      %c0_i32_102 = arith.constant 0 : i32
      %231 = vector.broadcast %c0_i32_102 : i32 to vector<8x128xi32>
      %232 = arith.select %7, %230, %231 : vector<8x128xi1>, vector<8x128xi32>
      %233 = arith.maxsi %229, %232 : vector<8x128xi32>
      %c8_i32_103 = arith.constant 8 : i32
      %234 = tpu.dynamic_rotate %233 by %c8_i32_103 dim 1 : vector<8x128xi32>, i32 -> vector<8x128xi32>
      %c0_i32_104 = arith.constant 0 : i32
      %235 = vector.broadcast %c0_i32_104 : i32 to vector<8x128xi32>
      %236 = arith.select %9, %234, %235 : vector<8x128xi1>, vector<8x128xi32>
      %237 = arith.maxsi %233, %236 : vector<8x128xi32>
      %c16_i32_105 = arith.constant 16 : i32
      %238 = tpu.dynamic_rotate %237 by %c16_i32_105 dim 1 : vector<8x128xi32>, i32 -> vector<8x128xi32>
      %c0_i32_106 = arith.constant 0 : i32
      %239 = vector.broadcast %c0_i32_106 : i32 to vector<8x128xi32>
      %240 = arith.select %11, %238, %239 : vector<8x128xi1>, vector<8x128xi32>
      %241 = arith.maxsi %237, %240 : vector<8x128xi32>
      %c32_i32_107 = arith.constant 32 : i32
      %242 = tpu.dynamic_rotate %241 by %c32_i32_107 dim 1 : vector<8x128xi32>, i32 -> vector<8x128xi32>
      %c0_i32_108 = arith.constant 0 : i32
      %243 = vector.broadcast %c0_i32_108 : i32 to vector<8x128xi32>
      %244 = arith.select %13, %242, %243 : vector<8x128xi1>, vector<8x128xi32>
      %245 = arith.maxsi %241, %244 : vector<8x128xi32>
      %c64_i32_109 = arith.constant 64 : i32
      %246 = tpu.dynamic_rotate %245 by %c64_i32_109 dim 1 : vector<8x128xi32>, i32 -> vector<8x128xi32>
      %c0_i32_110 = arith.constant 0 : i32
      %247 = vector.broadcast %c0_i32_110 : i32 to vector<8x128xi32>
      %248 = arith.select %15, %246, %247 : vector<8x128xi1>, vector<8x128xi32>
      %249 = arith.maxsi %245, %248 : vector<8x128xi32>
      %250 = arith.maxsi %211, %249 : vector<8x128xi32>
      %251 = vector.extract_strided_slice %55 {offsets = [0, 5], sizes = [8, 1], strides = [1, 1]} : vector<8x8xi32> to vector<8x1xi32>
      %252 = vector.broadcast %251 : vector<8x1xi32> to vector<8x128xi32>
      %253 = arith.cmpi eq, %0, %252 : vector<8x128xi32>
      %c1_i32_111 = arith.constant 1 : i32
      %254 = tpu.dynamic_rotate %250 by %c1_i32_111 dim 1 : vector<8x128xi32>, i32 -> vector<8x128xi32>
      %c0_i32_112 = arith.constant 0 : i32
      %255 = vector.broadcast %c0_i32_112 : i32 to vector<8x128xi32>
      %256 = arith.select %3, %254, %255 : vector<8x128xi1>, vector<8x128xi32>
      %c1_i32_113 = arith.constant 1 : i32
      %257 = vector.broadcast %c1_i32_113 : i32 to vector<8x128xi32>
      %258 = arith.addi %256, %257 : vector<8x128xi32>
      %c0_i32_114 = arith.constant 0 : i32
      %259 = vector.broadcast %c0_i32_114 : i32 to vector<8x128xi32>
      %260 = arith.select %253, %258, %259 : vector<8x128xi1>, vector<8x128xi32>
      %c1_i32_115 = arith.constant 1 : i32
      %261 = tpu.dynamic_rotate %260 by %c1_i32_115 dim 1 : vector<8x128xi32>, i32 -> vector<8x128xi32>
      %c0_i32_116 = arith.constant 0 : i32
      %262 = vector.broadcast %c0_i32_116 : i32 to vector<8x128xi32>
      %263 = arith.select %3, %261, %262 : vector<8x128xi1>, vector<8x128xi32>
      %264 = arith.maxsi %260, %263 : vector<8x128xi32>
      %c2_i32_117 = arith.constant 2 : i32
      %265 = tpu.dynamic_rotate %264 by %c2_i32_117 dim 1 : vector<8x128xi32>, i32 -> vector<8x128xi32>
      %c0_i32_118 = arith.constant 0 : i32
      %266 = vector.broadcast %c0_i32_118 : i32 to vector<8x128xi32>
      %267 = arith.select %5, %265, %266 : vector<8x128xi1>, vector<8x128xi32>
      %268 = arith.maxsi %264, %267 : vector<8x128xi32>
      %c4_i32_119 = arith.constant 4 : i32
      %269 = tpu.dynamic_rotate %268 by %c4_i32_119 dim 1 : vector<8x128xi32>, i32 -> vector<8x128xi32>
      %c0_i32_120 = arith.constant 0 : i32
      %270 = vector.broadcast %c0_i32_120 : i32 to vector<8x128xi32>
      %271 = arith.select %7, %269, %270 : vector<8x128xi1>, vector<8x128xi32>
      %272 = arith.maxsi %268, %271 : vector<8x128xi32>
      %c8_i32_121 = arith.constant 8 : i32
      %273 = tpu.dynamic_rotate %272 by %c8_i32_121 dim 1 : vector<8x128xi32>, i32 -> vector<8x128xi32>
      %c0_i32_122 = arith.constant 0 : i32
      %274 = vector.broadcast %c0_i32_122 : i32 to vector<8x128xi32>
      %275 = arith.select %9, %273, %274 : vector<8x128xi1>, vector<8x128xi32>
      %276 = arith.maxsi %272, %275 : vector<8x128xi32>
      %c16_i32_123 = arith.constant 16 : i32
      %277 = tpu.dynamic_rotate %276 by %c16_i32_123 dim 1 : vector<8x128xi32>, i32 -> vector<8x128xi32>
      %c0_i32_124 = arith.constant 0 : i32
      %278 = vector.broadcast %c0_i32_124 : i32 to vector<8x128xi32>
      %279 = arith.select %11, %277, %278 : vector<8x128xi1>, vector<8x128xi32>
      %280 = arith.maxsi %276, %279 : vector<8x128xi32>
      %c32_i32_125 = arith.constant 32 : i32
      %281 = tpu.dynamic_rotate %280 by %c32_i32_125 dim 1 : vector<8x128xi32>, i32 -> vector<8x128xi32>
      %c0_i32_126 = arith.constant 0 : i32
      %282 = vector.broadcast %c0_i32_126 : i32 to vector<8x128xi32>
      %283 = arith.select %13, %281, %282 : vector<8x128xi1>, vector<8x128xi32>
      %284 = arith.maxsi %280, %283 : vector<8x128xi32>
      %c64_i32_127 = arith.constant 64 : i32
      %285 = tpu.dynamic_rotate %284 by %c64_i32_127 dim 1 : vector<8x128xi32>, i32 -> vector<8x128xi32>
      %c0_i32_128 = arith.constant 0 : i32
      %286 = vector.broadcast %c0_i32_128 : i32 to vector<8x128xi32>
      %287 = arith.select %15, %285, %286 : vector<8x128xi1>, vector<8x128xi32>
      %288 = arith.maxsi %284, %287 : vector<8x128xi32>
      %289 = arith.maxsi %250, %288 : vector<8x128xi32>
      %290 = vector.extract_strided_slice %55 {offsets = [0, 6], sizes = [8, 1], strides = [1, 1]} : vector<8x8xi32> to vector<8x1xi32>
      %291 = vector.broadcast %290 : vector<8x1xi32> to vector<8x128xi32>
      %292 = arith.cmpi eq, %0, %291 : vector<8x128xi32>
      %c1_i32_129 = arith.constant 1 : i32
      %293 = tpu.dynamic_rotate %289 by %c1_i32_129 dim 1 : vector<8x128xi32>, i32 -> vector<8x128xi32>
      %c0_i32_130 = arith.constant 0 : i32
      %294 = vector.broadcast %c0_i32_130 : i32 to vector<8x128xi32>
      %295 = arith.select %3, %293, %294 : vector<8x128xi1>, vector<8x128xi32>
      %c1_i32_131 = arith.constant 1 : i32
      %296 = vector.broadcast %c1_i32_131 : i32 to vector<8x128xi32>
      %297 = arith.addi %295, %296 : vector<8x128xi32>
      %c0_i32_132 = arith.constant 0 : i32
      %298 = vector.broadcast %c0_i32_132 : i32 to vector<8x128xi32>
      %299 = arith.select %292, %297, %298 : vector<8x128xi1>, vector<8x128xi32>
      %c1_i32_133 = arith.constant 1 : i32
      %300 = tpu.dynamic_rotate %299 by %c1_i32_133 dim 1 : vector<8x128xi32>, i32 -> vector<8x128xi32>
      %c0_i32_134 = arith.constant 0 : i32
      %301 = vector.broadcast %c0_i32_134 : i32 to vector<8x128xi32>
      %302 = arith.select %3, %300, %301 : vector<8x128xi1>, vector<8x128xi32>
      %303 = arith.maxsi %299, %302 : vector<8x128xi32>
      %c2_i32_135 = arith.constant 2 : i32
      %304 = tpu.dynamic_rotate %303 by %c2_i32_135 dim 1 : vector<8x128xi32>, i32 -> vector<8x128xi32>
      %c0_i32_136 = arith.constant 0 : i32
      %305 = vector.broadcast %c0_i32_136 : i32 to vector<8x128xi32>
      %306 = arith.select %5, %304, %305 : vector<8x128xi1>, vector<8x128xi32>
      %307 = arith.maxsi %303, %306 : vector<8x128xi32>
      %c4_i32_137 = arith.constant 4 : i32
      %308 = tpu.dynamic_rotate %307 by %c4_i32_137 dim 1 : vector<8x128xi32>, i32 -> vector<8x128xi32>
      %c0_i32_138 = arith.constant 0 : i32
      %309 = vector.broadcast %c0_i32_138 : i32 to vector<8x128xi32>
      %310 = arith.select %7, %308, %309 : vector<8x128xi1>, vector<8x128xi32>
      %311 = arith.maxsi %307, %310 : vector<8x128xi32>
      %c8_i32_139 = arith.constant 8 : i32
      %312 = tpu.dynamic_rotate %311 by %c8_i32_139 dim 1 : vector<8x128xi32>, i32 -> vector<8x128xi32>
      %c0_i32_140 = arith.constant 0 : i32
      %313 = vector.broadcast %c0_i32_140 : i32 to vector<8x128xi32>
      %314 = arith.select %9, %312, %313 : vector<8x128xi1>, vector<8x128xi32>
      %315 = arith.maxsi %311, %314 : vector<8x128xi32>
      %c16_i32_141 = arith.constant 16 : i32
      %316 = tpu.dynamic_rotate %315 by %c16_i32_141 dim 1 : vector<8x128xi32>, i32 -> vector<8x128xi32>
      %c0_i32_142 = arith.constant 0 : i32
      %317 = vector.broadcast %c0_i32_142 : i32 to vector<8x128xi32>
      %318 = arith.select %11, %316, %317 : vector<8x128xi1>, vector<8x128xi32>
      %319 = arith.maxsi %315, %318 : vector<8x128xi32>
      %c32_i32_143 = arith.constant 32 : i32
      %320 = tpu.dynamic_rotate %319 by %c32_i32_143 dim 1 : vector<8x128xi32>, i32 -> vector<8x128xi32>
      %c0_i32_144 = arith.constant 0 : i32
      %321 = vector.broadcast %c0_i32_144 : i32 to vector<8x128xi32>
      %322 = arith.select %13, %320, %321 : vector<8x128xi1>, vector<8x128xi32>
      %323 = arith.maxsi %319, %322 : vector<8x128xi32>
      %c64_i32_145 = arith.constant 64 : i32
      %324 = tpu.dynamic_rotate %323 by %c64_i32_145 dim 1 : vector<8x128xi32>, i32 -> vector<8x128xi32>
      %c0_i32_146 = arith.constant 0 : i32
      %325 = vector.broadcast %c0_i32_146 : i32 to vector<8x128xi32>
      %326 = arith.select %15, %324, %325 : vector<8x128xi1>, vector<8x128xi32>
      %327 = arith.maxsi %323, %326 : vector<8x128xi32>
      %328 = arith.maxsi %289, %327 : vector<8x128xi32>
      %329 = vector.extract_strided_slice %55 {offsets = [0, 7], sizes = [8, 1], strides = [1, 1]} : vector<8x8xi32> to vector<8x1xi32>
      %330 = vector.broadcast %329 : vector<8x1xi32> to vector<8x128xi32>
      %331 = arith.cmpi eq, %0, %330 : vector<8x128xi32>
      %c1_i32_147 = arith.constant 1 : i32
      %332 = tpu.dynamic_rotate %328 by %c1_i32_147 dim 1 : vector<8x128xi32>, i32 -> vector<8x128xi32>
      %c0_i32_148 = arith.constant 0 : i32
      %333 = vector.broadcast %c0_i32_148 : i32 to vector<8x128xi32>
      %334 = arith.select %3, %332, %333 : vector<8x128xi1>, vector<8x128xi32>
      %c1_i32_149 = arith.constant 1 : i32
      %335 = vector.broadcast %c1_i32_149 : i32 to vector<8x128xi32>
      %336 = arith.addi %334, %335 : vector<8x128xi32>
      %c0_i32_150 = arith.constant 0 : i32
      %337 = vector.broadcast %c0_i32_150 : i32 to vector<8x128xi32>
      %338 = arith.select %331, %336, %337 : vector<8x128xi1>, vector<8x128xi32>
      %c1_i32_151 = arith.constant 1 : i32
      %339 = tpu.dynamic_rotate %338 by %c1_i32_151 dim 1 : vector<8x128xi32>, i32 -> vector<8x128xi32>
      %c0_i32_152 = arith.constant 0 : i32
      %340 = vector.broadcast %c0_i32_152 : i32 to vector<8x128xi32>
      %341 = arith.select %3, %339, %340 : vector<8x128xi1>, vector<8x128xi32>
      %342 = arith.maxsi %338, %341 : vector<8x128xi32>
      %c2_i32_153 = arith.constant 2 : i32
      %343 = tpu.dynamic_rotate %342 by %c2_i32_153 dim 1 : vector<8x128xi32>, i32 -> vector<8x128xi32>
      %c0_i32_154 = arith.constant 0 : i32
      %344 = vector.broadcast %c0_i32_154 : i32 to vector<8x128xi32>
      %345 = arith.select %5, %343, %344 : vector<8x128xi1>, vector<8x128xi32>
      %346 = arith.maxsi %342, %345 : vector<8x128xi32>
      %c4_i32_155 = arith.constant 4 : i32
      %347 = tpu.dynamic_rotate %346 by %c4_i32_155 dim 1 : vector<8x128xi32>, i32 -> vector<8x128xi32>
      %c0_i32_156 = arith.constant 0 : i32
      %348 = vector.broadcast %c0_i32_156 : i32 to vector<8x128xi32>
      %349 = arith.select %7, %347, %348 : vector<8x128xi1>, vector<8x128xi32>
      %350 = arith.maxsi %346, %349 : vector<8x128xi32>
      %c8_i32_157 = arith.constant 8 : i32
      %351 = tpu.dynamic_rotate %350 by %c8_i32_157 dim 1 : vector<8x128xi32>, i32 -> vector<8x128xi32>
      %c0_i32_158 = arith.constant 0 : i32
      %352 = vector.broadcast %c0_i32_158 : i32 to vector<8x128xi32>
      %353 = arith.select %9, %351, %352 : vector<8x128xi1>, vector<8x128xi32>
      %354 = arith.maxsi %350, %353 : vector<8x128xi32>
      %c16_i32_159 = arith.constant 16 : i32
      %355 = tpu.dynamic_rotate %354 by %c16_i32_159 dim 1 : vector<8x128xi32>, i32 -> vector<8x128xi32>
      %c0_i32_160 = arith.constant 0 : i32
      %356 = vector.broadcast %c0_i32_160 : i32 to vector<8x128xi32>
      %357 = arith.select %11, %355, %356 : vector<8x128xi1>, vector<8x128xi32>
      %358 = arith.maxsi %354, %357 : vector<8x128xi32>
      %c32_i32_161 = arith.constant 32 : i32
      %359 = tpu.dynamic_rotate %358 by %c32_i32_161 dim 1 : vector<8x128xi32>, i32 -> vector<8x128xi32>
      %c0_i32_162 = arith.constant 0 : i32
      %360 = vector.broadcast %c0_i32_162 : i32 to vector<8x128xi32>
      %361 = arith.select %13, %359, %360 : vector<8x128xi1>, vector<8x128xi32>
      %362 = arith.maxsi %358, %361 : vector<8x128xi32>
      %c64_i32_163 = arith.constant 64 : i32
      %363 = tpu.dynamic_rotate %362 by %c64_i32_163 dim 1 : vector<8x128xi32>, i32 -> vector<8x128xi32>
      %c0_i32_164 = arith.constant 0 : i32
      %364 = vector.broadcast %c0_i32_164 : i32 to vector<8x128xi32>
      %365 = arith.select %15, %363, %364 : vector<8x128xi1>, vector<8x128xi32>
      %366 = arith.maxsi %362, %365 : vector<8x128xi32>
      %367 = arith.maxsi %328, %366 : vector<8x128xi32>
      scf.yield %367 : vector<8x128xi32>
    }
    %cst = arith.constant dense<-2147483648> : vector<8xi32>
    %22 = vector.multi_reduction <maxsi>, %21, %cst [1] : vector<8x128xi32> to vector<8xi32>
    %23 = vector.shape_cast %22 : vector<8xi32> to vector<8x1xi32>
    %24 = arith.sitofp %23 : vector<8x1xi32> to vector<8x1xf32>
    %c0_3 = arith.constant 0 : index
    %c0_4 = arith.constant 0 : index
    %25 = vector.load %arg4[%c0_3, %c0_4] : memref<8x1xf32, #tpu.memory_space<vmem>>, vector<8x1xf32>
    %c0_5 = arith.constant 0 : index
    %c0_6 = arith.constant 0 : index
    %26 = vector.load %arg5[%c0_5, %c0_6] : memref<8x1xf32, #tpu.memory_space<vmem>>, vector<8x1xf32>
    %cst_7 = arith.constant 0.000000e+00 : f32
    %27 = vector.broadcast %cst_7 : f32 to vector<8x1xf32>
    %28 = arith.cmpf ogt, %26, %27 : vector<8x1xf32>
    %cst_8 = arith.constant 1.000000e+00 : f32
    %29 = vector.broadcast %cst_8 : f32 to vector<8x1xf32>
    %30 = arith.maximumf %26, %29 : vector<8x1xf32>
    %31 = arith.divf %24, %30 : vector<8x1xf32>
    %cst_9 = arith.constant 0.000000e+00 : f32
    %32 = vector.broadcast %cst_9 : f32 to vector<8x1xf32>
    %33 = arith.select %28, %31, %32 : vector<8x1xi1>, vector<8x1xf32>
    %cst_10 = arith.constant 0.000000e+00 : f32
    %34 = vector.broadcast %cst_10 : f32 to vector<8x1xf32>
    %35 = arith.cmpf ogt, %25, %34 : vector<8x1xf32>
    %cst_11 = arith.constant 1.000000e+00 : f32
    %36 = vector.broadcast %cst_11 : f32 to vector<8x1xf32>
    %37 = arith.maximumf %25, %36 : vector<8x1xf32>
    %38 = arith.divf %24, %37 : vector<8x1xf32>
    %cst_12 = arith.constant 0.000000e+00 : f32
    %39 = vector.broadcast %cst_12 : f32 to vector<8x1xf32>
    %40 = arith.select %35, %38, %39 : vector<8x1xi1>, vector<8x1xf32>
    %41 = arith.addf %33, %40 : vector<8x1xf32>
    %cst_13 = arith.constant 0.000000e+00 : f32
    %42 = vector.broadcast %cst_13 : f32 to vector<8x1xf32>
    %43 = arith.cmpf ogt, %41, %42 : vector<8x1xf32>
    %cst_14 = arith.constant 2.000000e+00 : f32
    %44 = vector.broadcast %cst_14 : f32 to vector<8x1xf32>
    %45 = arith.mulf %44, %33 : vector<8x1xf32>
    %46 = arith.mulf %45, %40 : vector<8x1xf32>
    %cst_15 = arith.constant 9.99999996E-13 : f32
    %47 = vector.broadcast %cst_15 : f32 to vector<8x1xf32>
    %48 = arith.maximumf %41, %47 : vector<8x1xf32>
    %49 = arith.divf %46, %48 : vector<8x1xf32>
    %cst_16 = arith.constant 0.000000e+00 : f32
    %50 = vector.broadcast %cst_16 : f32 to vector<8x1xf32>
    %51 = arith.select %43, %49, %50 : vector<8x1xi1>, vector<8x1xf32>
    %c0_17 = arith.constant 0 : index
    %c0_18 = arith.constant 0 : index
    %52 = vector.load %arg6[%c0_17, %c0_18] : memref<8x1xf32, #tpu.memory_space<vmem>>, vector<8x1xf32>
    tpu.vector_store %arg6[%c0_17, %c0_18], %51 {strides = array<i32>} : memref<8x1xf32, #tpu.memory_space<vmem>>, vector<8x1xf32>,
    return
  }
  func.func @transform_0(%arg0: i32, %arg1: memref<1xi32, #tpu.memory_space<smem>>) -> (i32, i32, i32) {
    %c0_i32 = arith.constant 0 : i32
    %c0_i32_0 = arith.constant 0 : i32
    %c0_i32_1 = arith.constant 0 : i32
    return %c0_i32, %arg0, %c0_i32_0 : i32, i32, i32
  }
  func.func @transform_1(%arg0: i32, %arg1: memref<1xi32, #tpu.memory_space<smem>>) -> (i32, i32) {
    %c0_i32 = arith.constant 0 : i32
    %c0_i32_0 = arith.constant 0 : i32
    return %arg0, %c0_i32 : i32, i32
  }
  func.func @transform_2(%arg0: i32, %arg1: memref<1xi32, #tpu.memory_space<smem>>) -> (i32, i32) {
    %c0_i32 = arith.constant 0 : i32
    %c0_i32_0 = arith.constant 0 : i32
    return %arg0, %c0_i32 : i32, i32
  }
  func.func @transform_3(%arg0: i32, %arg1: memref<1xi32, #tpu.memory_space<smem>>) -> (i32, i32) {
    %c0_i32 = arith.constant 0 : i32
    %c0_i32_0 = arith.constant 0 : i32
    return %arg0, %c0_i32 : i32, i32
  }
  func.func @transform_4(%arg0: i32, %arg1: memref<1xi32, #tpu.memory_space<smem>>) -> (i32, i32) {
    %c0_i32 = arith.constant 0 : i32
    %c0_i32_0 = arith.constant 0 : i32
    return %arg0, %c0_i32 : i32, i32
  }
}

</mosaic_0001>

<llo_original>
// kernel: tpu_custom_call.1
$region0: #{tpu_custom_call.1}
  #allocation0 [shape = 'u32[]', space=smem, size = 0x4, offset = 0x4, fixed_abs, tag = 'smem constant byte address 0x4 - core index']
  #allocation1 [shape = 'u32[144,128]{1,0:T(1,128)}', space=vmem, size = 0x12000, scoped, tag = 'internal scratch']
  #allocation2 [shape = 's32[1]{0}', space=sflag, size = 0x4, scoped, tag = 'scoped memory for tpu_custom_call.1']
  #allocation3 [shape = 's32[1]{0:T(128)S(6)}', space=smem, size = 0x200, scoped, tag = 'prefetched SMEM operand 0']
  %s0 = inlined_call_operand.<no memory space> [shape: s32[1], index: 0, kind: input, shape index: {}]
  %s1 = inlined_call_operand.vmem [shape: s32[1,8,8], index: 1, kind: input, shape index: {}]
  %s2 = inlined_call_operand.vmem [shape: s32[8,128], index: 2, kind: input, shape index: {}]
  %s3 = inlined_call_operand.vmem [shape: f32[8,1], index: 3, kind: input, shape index: {}]
  %s4 = inlined_call_operand.vmem [shape: f32[8,1], index: 4, kind: input, shape index: {}]
  %s5 = inlined_call_operand.vmem [shape: f32[8,1], index: 5, kind: output, shape index: {}]
  %s6 = sld [smem:[#allocation0]]
  $region33: #{tpu_custom_call.1} parent=0
    _
  %s8 = ssub.s32 1, %s6
  %s9 = scalar_select 0, %s8, %s6
  %10 = sst [smem:[#allocation3]] %s0
  // Predicated region
  $region2: #{tpu_custom_call.1} parent=0 // pred_check
    _
  $region3: #{tpu_custom_call.1} parent=0 // pred_check_branch
    %12 = sbr.rel (0) target = $region5
  $region4: #{tpu_custom_call.1} parent=0 // pred_region
    _
  $region5: #{tpu_custom_call.1} parent=0 // pred_fallthru
    _
  // Predicated region
  $region6: #{tpu_custom_call.1} parent=0 // pred_check
    _
  $region7: #{tpu_custom_call.1} parent=0 // pred_check_branch
    %14 = sbr.rel (0) target = $region9
  $region8: #{tpu_custom_call.1} parent=0 // pred_region
    _
  $region9: #{tpu_custom_call.1} parent=0 // pred_fallthru
    _
  // Predicated region
  $region10: #{tpu_custom_call.1} parent=0 // pred_check
    _
  $region11: #{tpu_custom_call.1} parent=0 // pred_check_branch
    %16 = sbr.rel (0) target = $region13
  $region12: #{tpu_custom_call.1} parent=0 // pred_region
    _
  $region13: #{tpu_custom_call.1} parent=0 // pred_fallthru
    _
  // Predicated region
  $region14: #{tpu_custom_call.1} parent=0 // pred_check
    _
  $region15: #{tpu_custom_call.1} parent=0 // pred_check_branch
    %18 = sbr.rel (0) target = $region17
  $region16: #{tpu_custom_call.1} parent=0 // pred_region
    _
  $region17: #{tpu_custom_call.1} parent=0 // pred_fallthru
    _
  %v19 = vld [vmem:[%s2] sm:$0xff]
  %v20 = vlaneseq
  %v21 = vand.u32 %v20, 127
  %vm22 = vcmp.ge.s32.totalorder %v21, 1
  %vm23 = vcmp.ge.s32.totalorder %v21, 2
  %vm24 = vcmp.ge.s32.totalorder %v21, 4
  %vm25 = vcmp.ge.s32.totalorder %v21, 8
  %vm26 = vcmp.ge.s32.totalorder %v21, 16
  %vm27 = vcmp.ge.s32.totalorder %v21, 32
  %vm28 = vcmp.ge.s32.totalorder %v21, 64
  %s29 = sld [smem:[#allocation3]]
  // While loop
  $region18: #{tpu_custom_call.1} parent=0 // loop_pre_header
    _
  $region19: #{tpu_custom_call.1} parent=0 // loop_header
    %s31 = sphi 0, %s33
    %p32 = scmp.ge.s32.totalorder %s31, %s29
    %v36 = vphi 0, %v407
  $region20: #{tpu_custom_call.1} parent=0 // loop_header_branch
    %35 = sbr.rel (%p32) target = $region24
  $region21: #{tpu_custom_call.1} parent=0 // loop_body
    %s37 = smul.u32 %s31, 8
    %s38 = scalar_lea.vmem %s1, %s37
    %v39 = vld [vmem:[%s38] sm:$0xff]
    %40 = vset.pattern.permute.xlu0 0
    %41 = vperm.xlu0 %40, %v39
    %v42 = vpop.permute.xlu0 %41
    %vm43 = vcmp.eq.s32.totalorder %v19, %v42
    %44 = vrot.lane.b32.xlu0 %v36, 1
    %v45 = vpop.permute.xlu0 %44
    %v46 = vsel %vm22, %v45, 0
    %v47 = vadd.s32 %v46, 1
    %v48 = vsel %vm43, %v47, 0
    %49 = vrot.lane.b32.xlu0 %v48, 1
    %v50 = vpop.permute.xlu0 %49
    %v51 = vsel %vm22, %v50, 0
    %vm52 = vcmp.gt.s32.totalorder %v48, %v51
    %v53 = vsel %vm52, %v48, %v51
    %54 = vrot.lane.b32.xlu0 %v53, 2
    %v55 = vpop.permute.xlu0 %54
    %v56 = vsel %vm23, %v55, 0
    %vm57 = vcmp.gt.s32.totalorder %v53, %v56
    %v58 = vsel %vm57, %v53, %v56
    %59 = vrot.lane.b32.xlu0 %v58, 4
    %v60 = vpop.permute.xlu0 %59
    %v61 = vsel %vm24, %v60, 0
    %vm62 = vcmp.gt.s32.totalorder %v58, %v61
    %v63 = vsel %vm62, %v58, %v61
    %64 = vrot.lane.b32.xlu0 %v63, 8
    %v65 = vpop.permute.xlu0 %64
    %v66 = vsel %vm25, %v65, 0
    %vm67 = vcmp.gt.s32.totalorder %v63, %v66
    %v68 = vsel %vm67, %v63, %v66
    %69 = vrot.lane.b32.xlu0 %v68, 16
    %v70 = vpop.permute.xlu0 %69
    %v71 = vsel %vm26, %v70, 0
    %vm72 = vcmp.gt.s32.totalorder %v68, %v71
    %v73 = vsel %vm72, %v68, %v71
    %74 = vrot.lane.b32.xlu0 %v73, 32
    %v75 = vpop.permute.xlu0 %74
    %v76 = vsel %vm27, %v75, 0
    %vm77 = vcmp.gt.s32.totalorder %v73, %v76
    %v78 = vsel %vm77, %v73, %v76
    %79 = vrot.lane.b32.xlu0 %v78, 64
    %v80 = vpop.permute.xlu0 %79
    %v81 = vsel %vm28, %v80, 0
    %vm82 = vcmp.gt.s32.totalorder %v78, %v81
    %v83 = vsel %vm82, %v78, %v81
    %vm84 = vcmp.gt.s32.totalorder %v36, %v83
    %v85 = vsel %vm84, %v36, %v83
    %86 = vset.pattern.permute.xlu0 1
    %87 = vperm.xlu0 %86, %v39
    %v88 = vpop.permute.xlu0 %87
    %vm89 = vcmp.eq.s32.totalorder %v19, %v88
    %90 = vrot.lane.b32.xlu0 %v85, 1
    %v91 = vpop.permute.xlu0 %90
    %v92 = vsel %vm22, %v91, 0
    %v93 = vadd.s32 %v92, 1
    %v94 = vsel %vm89, %v93, 0
    %95 = vrot.lane.b32.xlu0 %v94, 1
    %v96 = vpop.permute.xlu0 %95
    %v97 = vsel %vm22, %v96, 0
    %vm98 = vcmp.gt.s32.totalorder %v94, %v97
    %v99 = vsel %vm98, %v94, %v97
    %100 = vrot.lane.b32.xlu0 %v99, 2
    %v101 = vpop.permute.xlu0 %100
    %v102 = vsel %vm23, %v101, 0
    %vm103 = vcmp.gt.s32.totalorder %v99, %v102
    %v104 = vsel %vm103, %v99, %v102
    %105 = vrot.lane.b32.xlu0 %v104, 4
    %v106 = vpop.permute.xlu0 %105
    %v107 = vsel %vm24, %v106, 0
    %vm108 = vcmp.gt.s32.totalorder %v104, %v107
    %v109 = vsel %vm108, %v104, %v107
    %110 = vrot.lane.b32.xlu0 %v109, 8
    %v111 = vpop.permute.xlu0 %110
    %v112 = vsel %vm25, %v111, 0
    %vm113 = vcmp.gt.s32.totalorder %v109, %v112
    %v114 = vsel %vm113, %v109, %v112
    %115 = vrot.lane.b32.xlu0 %v114, 16
    %v116 = vpop.permute.xlu0 %115
    %v117 = vsel %vm26, %v116, 0
    %vm118 = vcmp.gt.s32.totalorder %v114, %v117
    %v119 = vsel %vm118, %v114, %v117
    %120 = vrot.lane.b32.xlu0 %v119, 32
    %v121 = vpop.permute.xlu0 %120
    %v122 = vsel %vm27, %v121, 0
    %vm123 = vcmp.gt.s32.totalorder %v119, %v122
    %v124 = vsel %vm123, %v119, %v122
    %125 = vrot.lane.b32.xlu0 %v124, 64
    %v126 = vpop.permute.xlu0 %125
    %v127 = vsel %vm28, %v126, 0
    %vm128 = vcmp.gt.s32.totalorder %v124, %v127
    %v129 = vsel %vm128, %v124, %v127
    %vm130 = vcmp.gt.s32.totalorder %v85, %v129
    %v131 = vsel %vm130, %v85, %v129
    %132 = vset.pattern.permute.xlu0 2
    %133 = vperm.xlu0 %132, %v39
    %v134 = vpop.permute.xlu0 %133
    %vm135 = vcmp.eq.s32.totalorder %v19, %v134
    %136 = vrot.lane.b32.xlu0 %v131, 1
    %v137 = vpop.permute.xlu0 %136
    %v138 = vsel %vm22, %v137, 0
    %v139 = vadd.s32 %v138, 1
    %v140 = vsel %vm135, %v139, 0
    %141 = vrot.lane.b32.xlu0 %v140, 1
    %v142 = vpop.permute.xlu0 %141
    %v143 = vsel %vm22, %v142, 0
    %vm144 = vcmp.gt.s32.totalorder %v140, %v143
    %v145 = vsel %vm144, %v140, %v143
    %146 = vrot.lane.b32.xlu0 %v145, 2
    %v147 = vpop.permute.xlu0 %146
    %v148 = vsel %vm23, %v147, 0
    %vm149 = vcmp.gt.s32.totalorder %v145, %v148
    %v150 = vsel %vm149, %v145, %v148
    %151 = vrot.lane.b32.xlu0 %v150, 4
    %v152 = vpop.permute.xlu0 %151
    %v153 = vsel %vm24, %v152, 0
    %vm154 = vcmp.gt.s32.totalorder %v150, %v153
    %v155 = vsel %vm154, %v150, %v153
    %156 = vrot.lane.b32.xlu0 %v155, 8
    %v157 = vpop.permute.xlu0 %156
    %v158 = vsel %vm25, %v157, 0
    %vm159 = vcmp.gt.s32.totalorder %v155, %v158
    %v160 = vsel %vm159, %v155, %v158
    %161 = vrot.lane.b32.xlu0 %v160, 16
    %v162 = vpop.permute.xlu0 %161
    %v163 = vsel %vm26, %v162, 0
    %vm164 = vcmp.gt.s32.totalorder %v160, %v163
    %v165 = vsel %vm164, %v160, %v163
    %166 = vrot.lane.b32.xlu0 %v165, 32
    %v167 = vpop.permute.xlu0 %166
    %v168 = vsel %vm27, %v167, 0
    %vm169 = vcmp.gt.s32.totalorder %v165, %v168
    %v170 = vsel %vm169, %v165, %v168
    %171 = vrot.lane.b32.xlu0 %v170, 64
    %v172 = vpop.permute.xlu0 %171
    %v173 = vsel %vm28, %v172, 0
    %vm174 = vcmp.gt.s32.totalorder %v170, %v173
    %v175 = vsel %vm174, %v170, %v173
    %vm176 = vcmp.gt.s32.totalorder %v131, %v175
    %v177 = vsel %vm176, %v131, %v175
    %178 = vset.pattern.permute.xlu0 3
    %179 = vperm.xlu0 %178, %v39
    %v180 = vpop.permute.xlu0 %179
    %vm181 = vcmp.eq.s32.totalorder %v19, %v180
    %182 = vrot.lane.b32.xlu0 %v177, 1
    %v183 = vpop.permute.xlu0 %182
    %v184 = vsel %vm22, %v183, 0
    %v185 = vadd.s32 %v184, 1
    %v186 = vsel %vm181, %v185, 0
    %187 = vrot.lane.b32.xlu0 %v186, 1
    %v188 = vpop.permute.xlu0 %187
    %v189 = vsel %vm22, %v188, 0
    %vm190 = vcmp.gt.s32.totalorder %v186, %v189
    %v191 = vsel %vm190, %v186, %v189
    %192 = vrot.lane.b32.xlu0 %v191, 2
    %v193 = vpop.permute.xlu0 %192
    %v194 = vsel %vm23, %v193, 0
    %vm195 = vcmp.gt.s32.totalorder %v191, %v194
    %v196 = vsel %vm195, %v191, %v194
    %197 = vrot.lane.b32.xlu0 %v196, 4
    %v198 = vpop.permute.xlu0 %197
    %v199 = vsel %vm24, %v198, 0
    %vm200 = vcmp.gt.s32.totalorder %v196, %v199
    %v201 = vsel %vm200, %v196, %v199
    %202 = vrot.lane.b32.xlu0 %v201, 8
    %v203 = vpop.permute.xlu0 %202
    %v204 = vsel %vm25, %v203, 0
    %vm205 = vcmp.gt.s32.totalorder %v201, %v204
    %v206 = vsel %vm205, %v201, %v204
    %207 = vrot.lane.b32.xlu0 %v206, 16
    %v208 = vpop.permute.xlu0 %207
    %v209 = vsel %vm26, %v208, 0
    %vm210 = vcmp.gt.s32.totalorder %v206, %v209
    %v211 = vsel %vm210, %v206, %v209
    %212 = vrot.lane.b32.xlu0 %v211, 32
    %v213 = vpop.permute.xlu0 %212
    %v214 = vsel %vm27, %v213, 0
    %vm215 = vcmp.gt.s32.totalorder %v211, %v214
    %v216 = vsel %vm215, %v211, %v214
    %217 = vrot.lane.b32.xlu0 %v216, 64
    %v218 = vpop.permute.xlu0 %217
    %v219 = vsel %vm28, %v218, 0
    %vm220 = vcmp.gt.s32.totalorder %v216, %v219
    %v221 = vsel %vm220, %v216, %v219
    %vm222 = vcmp.gt.s32.totalorder %v177, %v221
    %v223 = vsel %vm222, %v177, %v221
    %224 = vset.pattern.permute.xlu0 4
    %225 = vperm.xlu0 %224, %v39
    %v226 = vpop.permute.xlu0 %225
    %vm227 = vcmp.eq.s32.totalorder %v19, %v226
    %228 = vrot.lane.b32.xlu0 %v223, 1
    %v229 = vpop.permute.xlu0 %228
    %v230 = vsel %vm22, %v229, 0
    %v231 = vadd.s32 %v230, 1
    %v232 = vsel %vm227, %v231, 0
    %233 = vrot.lane.b32.xlu0 %v232, 1
    %v234 = vpop.permute.xlu0 %233
    %v235 = vsel %vm22, %v234, 0
    %vm236 = vcmp.gt.s32.totalorder %v232, %v235
    %v237 = vsel %vm236, %v232, %v235
    %238 = vrot.lane.b32.xlu0 %v237, 2
    %v239 = vpop.permute.xlu0 %238
    %v240 = vsel %vm23, %v239, 0
    %vm241 = vcmp.gt.s32.totalorder %v237, %v240
    %v242 = vsel %vm241, %v237, %v240
    %243 = vrot.lane.b32.xlu0 %v242, 4
    %v244 = vpop.permute.xlu0 %243
    %v245 = vsel %vm24, %v244, 0
    %vm246 = vcmp.gt.s32.totalorder %v242, %v245
    %v247 = vsel %vm246, %v242, %v245
    %248 = vrot.lane.b32.xlu0 %v247, 8
    %v249 = vpop.permute.xlu0 %248
    %v250 = vsel %vm25, %v249, 0
    %vm251 = vcmp.gt.s32.totalorder %v247, %v250
    %v252 = vsel %vm251, %v247, %v250
    %253 = vrot.lane.b32.xlu0 %v252, 16
    %v254 = vpop.permute.xlu0 %253
    %v255 = vsel %vm26, %v254, 0
    %vm256 = vcmp.gt.s32.totalorder %v252, %v255
    %v257 = vsel %vm256, %v252, %v255
    %258 = vrot.lane.b32.xlu0 %v257, 32
    %v259 = vpop.permute.xlu0 %258
    %v260 = vsel %vm27, %v259, 0
    %vm261 = vcmp.gt.s32.totalorder %v257, %v260
    %v262 = vsel %vm261, %v257, %v260
    %263 = vrot.lane.b32.xlu0 %v262, 64
    %v264 = vpop.permute.xlu0 %263
    %v265 = vsel %vm28, %v264, 0
    %vm266 = vcmp.gt.s32.totalorder %v262, %v265
    %v267 = vsel %vm266, %v262, %v265
    %vm268 = vcmp.gt.s32.totalorder %v223, %v267
    %v269 = vsel %vm268, %v223, %v267
    %270 = vset.pattern.permute.xlu0 5
    %271 = vperm.xlu0 %270, %v39
    %v272 = vpop.permute.xlu0 %271
    %vm273 = vcmp.eq.s32.totalorder %v19, %v272
    %274 = vrot.lane.b32.xlu0 %v269, 1
    %v275 = vpop.permute.xlu0 %274
    %v276 = vsel %vm22, %v275, 0
    %v277 = vadd.s32 %v276, 1
    %v278 = vsel %vm273, %v277, 0
    %279 = vrot.lane.b32.xlu0 %v278, 1
    %v280 = vpop.permute.xlu0 %279
    %v281 = vsel %vm22, %v280, 0
    %vm282 = vcmp.gt.s32.totalorder %v278, %v281
    %v283 = vsel %vm282, %v278, %v281
    %284 = vrot.lane.b32.xlu0 %v283, 2
    %v285 = vpop.permute.xlu0 %284
    %v286 = vsel %vm23, %v285, 0
    %vm287 = vcmp.gt.s32.totalorder %v283, %v286
    %v288 = vsel %vm287, %v283, %v286
    %289 = vrot.lane.b32.xlu0 %v288, 4
    %v290 = vpop.permute.xlu0 %289
    %v291 = vsel %vm24, %v290, 0
    %vm292 = vcmp.gt.s32.totalorder %v288, %v291
    %v293 = vsel %vm292, %v288, %v291
    %294 = vrot.lane.b32.xlu0 %v293, 8
    %v295 = vpop.permute.xlu0 %294
    %v296 = vsel %vm25, %v295, 0
    %vm297 = vcmp.gt.s32.totalorder %v293, %v296
    %v298 = vsel %vm297, %v293, %v296
    %299 = vrot.lane.b32.xlu0 %v298, 16
    %v300 = vpop.permute.xlu0 %299
    %v301 = vsel %vm26, %v300, 0
    %vm302 = vcmp.gt.s32.totalorder %v298, %v301
    %v303 = vsel %vm302, %v298, %v301
    %304 = vrot.lane.b32.xlu0 %v303, 32
    %v305 = vpop.permute.xlu0 %304
    %v306 = vsel %vm27, %v305, 0
    %vm307 = vcmp.gt.s32.totalorder %v303, %v306
    %v308 = vsel %vm307, %v303, %v306
    %309 = vrot.lane.b32.xlu0 %v308, 64
    %v310 = vpop.permute.xlu0 %309
    %v311 = vsel %vm28, %v310, 0
    %vm312 = vcmp.gt.s32.totalorder %v308, %v311
    %v313 = vsel %vm312, %v308, %v311
    %vm314 = vcmp.gt.s32.totalorder %v269, %v313
    %v315 = vsel %vm314, %v269, %v313
    %316 = vset.pattern.permute.xlu0 6
    %317 = vperm.xlu0 %316, %v39
    %v318 = vpop.permute.xlu0 %317
    %vm319 = vcmp.eq.s32.totalorder %v19, %v318
    %320 = vrot.lane.b32.xlu0 %v315, 1
    %v321 = vpop.permute.xlu0 %320
    %v322 = vsel %vm22, %v321, 0
    %v323 = vadd.s32 %v322, 1
    %v324 = vsel %vm319, %v323, 0
    %325 = vrot.lane.b32.xlu0 %v324, 1
    %v326 = vpop.permute.xlu0 %325
    %v327 = vsel %vm22, %v326, 0
    %vm328 = vcmp.gt.s32.totalorder %v324, %v327
    %v329 = vsel %vm328, %v324, %v327
    %330 = vrot.lane.b32.xlu0 %v329, 2
    %v331 = vpop.permute.xlu0 %330
    %v332 = vsel %vm23, %v331, 0
    %vm333 = vcmp.gt.s32.totalorder %v329, %v332
    %v334 = vsel %vm333, %v329, %v332
    %335 = vrot.lane.b32.xlu0 %v334, 4
    %v336 = vpop.permute.xlu0 %335
    %v337 = vsel %vm24, %v336, 0
    %vm338 = vcmp.gt.s32.totalorder %v334, %v337
    %v339 = vsel %vm338, %v334, %v337
    %340 = vrot.lane.b32.xlu0 %v339, 8
    %v341 = vpop.permute.xlu0 %340
    %v342 = vsel %vm25, %v341, 0
    %vm343 = vcmp.gt.s32.totalorder %v339, %v342
    %v344 = vsel %vm343, %v339, %v342
    %345 = vrot.lane.b32.xlu0 %v344, 16
    %v346 = vpop.permute.xlu0 %345
    %v347 = vsel %vm26, %v346, 0
    %vm348 = vcmp.gt.s32.totalorder %v344, %v347
    %v349 = vsel %vm348, %v344, %v347
    %350 = vrot.lane.b32.xlu0 %v349, 32
    %v351 = vpop.permute.xlu0 %350
    %v352 = vsel %vm27, %v351, 0
    %vm353 = vcmp.gt.s32.totalorder %v349, %v352
    %v354 = vsel %vm353, %v349, %v352
    %355 = vrot.lane.b32.xlu0 %v354, 64
    %v356 = vpop.permute.xlu0 %355
    %v357 = vsel %vm28, %v356, 0
    %vm358 = vcmp.gt.s32.totalorder %v354, %v357
    %v359 = vsel %vm358, %v354, %v357
    %vm360 = vcmp.gt.s32.totalorder %v315, %v359
    %v361 = vsel %vm360, %v315, %v359
    %362 = vset.pattern.permute.xlu0 7
    %363 = vperm.xlu0 %362, %v39
    %v364 = vpop.permute.xlu0 %363
    %vm365 = vcmp.eq.s32.totalorder %v19, %v364
    %366 = vrot.lane.b32.xlu0 %v361, 1
    %v367 = vpop.permute.xlu0 %366
    %v368 = vsel %vm22, %v367, 0
    %v369 = vadd.s32 %v368, 1
    %v370 = vsel %vm365, %v369, 0
    %371 = vrot.lane.b32.xlu0 %v370, 1
    %v372 = vpop.permute.xlu0 %371
    %v373 = vsel %vm22, %v372, 0
    %vm374 = vcmp.gt.s32.totalorder %v370, %v373
    %v375 = vsel %vm374, %v370, %v373
    %376 = vrot.lane.b32.xlu0 %v375, 2
    %v377 = vpop.permute.xlu0 %376
    %v378 = vsel %vm23, %v377, 0
    %vm379 = vcmp.gt.s32.totalorder %v375, %v378
    %v380 = vsel %vm379, %v375, %v378
    %381 = vrot.lane.b32.xlu0 %v380, 4
    %v382 = vpop.permute.xlu0 %381
    %v383 = vsel %vm24, %v382, 0
    %vm384 = vcmp.gt.s32.totalorder %v380, %v383
    %v385 = vsel %vm384, %v380, %v383
    %386 = vrot.lane.b32.xlu0 %v385, 8
    %v387 = vpop.permute.xlu0 %386
    %v388 = vsel %vm25, %v387, 0
    %vm389 = vcmp.gt.s32.totalorder %v385, %v388
    %v390 = vsel %vm389, %v385, %v388
    %391 = vrot.lane.b32.xlu0 %v390, 16
    %v392 = vpop.permute.xlu0 %391
    %v393 = vsel %vm26, %v392, 0
    %vm394 = vcmp.gt.s32.totalorder %v390, %v393
    %v395 = vsel %vm394, %v390, %v393
    %396 = vrot.lane.b32.xlu0 %v395, 32
    %v397 = vpop.permute.xlu0 %396
    %v398 = vsel %vm27, %v397, 0
    %vm399 = vcmp.gt.s32.totalorder %v395, %v398
    %v400 = vsel %vm399, %v395, %v398
    %401 = vrot.lane.b32.xlu0 %v400, 64
    %v402 = vpop.permute.xlu0 %401
    %v403 = vsel %vm28, %v402, 0
    %vm404 = vcmp.gt.s32.totalorder %v400, %v403
    %v405 = vsel %vm404, %v400, %v403
    %vm406 = vcmp.gt.s32.totalorder %v361, %v405
    %v407 = vsel %vm406, %v361, %v405
  $region22: #{tpu_custom_call.1} parent=0 // loop_footer
    %s33 = sadd.s32 %s31, 1
  $region23: #{tpu_custom_call.1} parent=0 // loop_footer_branch
    %30 = sbr.rel target = $region19
  $region24: #{tpu_custom_call.1} parent=0 // loop_exit
    _
  %v408 = vand.u32 %v36, 65535
  %v409 = vshra.s32 %v36, 16
  %v410 = vcvt.s32.f32 %v408
  %v411 = vcvt.s32.f32 %v409
  %412 = vmax.xlane.f32.xlu0 %v411
  %v413 = vpop.xlane.xlu0 %412
  %vm414 = vcmp.eq.f32.partialorder %v411, %v413
  %v415 = vsel %vm414, %v410, -inf
  %416 = vmax.xlane.f32.xlu0 %v415
  %v417 = vpop.xlane.xlu0 %416
  %v418 = vcvt.f32.s32 %v417
  %v419 = vcvt.f32.s32 %v413
  %v420 = vshll.u32 %v419, 16
  %v421 = vadd.s32 %v420, %v418
  %v422 = vcvt.s32.f32 %v421
  %v423 = vld [vmem:[%s3] sm:$0xff]
  %v424 = vld [vmem:[%s4] sm:$0xff]
  %vm425 = vcmp.gt.f32.partialorder %v424, 0.0
  %v426 = vmax.f32 %v424, 1.0
  %v427 = vrcp.pop %v426
  %v428 = vmul.f32 %v422, %v427
  %v429 = vsel %vm425, %v428, 0.0
  %vm430 = vcmp.gt.f32.partialorder %v423, 0.0
  %v431 = vmax.f32 %v423, 1.0
  %v432 = vrcp.pop %v431
  %v433 = vmul.f32 %v422, %v432
  %v434 = vsel %vm430, %v433, 0.0
  %v435 = vadd.f32 %v429, %v434
  %vm436 = vcmp.gt.f32.partialorder %v435, 0.0
  %v437 = vmul.f32 %v429, 2.0
  %v438 = vmul.f32 %v437, %v434
  %v439 = vmax.f32 %v435, 1e-12
  %v440 = vrcp.pop %v439
  %v441 = vmul.f32 %v438, %v440
  %v442 = vsel %vm436, %v441, 0.0
  %vm443 = vcmask 7168
  %444 = vst.msk [vmem:[%s5] sm:$0xff] %vm443, %v442
  // Predicated region
  $region25: #{tpu_custom_call.1} parent=0 // pred_check
    _
  $region26: #{tpu_custom_call.1} parent=0 // pred_check_branch
    %446 = sbr.rel (0) target = $region28
  $region27: #{tpu_custom_call.1} parent=0 // pred_region
    _
  $region28: #{tpu_custom_call.1} parent=0 // pred_fallthru
    _
  // Predicated region
  $region29: #{tpu_custom_call.1} parent=0 // pred_check
    _
  $region30: #{tpu_custom_call.1} parent=0 // pred_check_branch
    %448 = sbr.rel (0) target = $region32
  $region31: #{tpu_custom_call.1} parent=0 // pred_region
    _
  $region32: #{tpu_custom_call.1} parent=0 // pred_fallthru
    _

</llo_original>
